<compile_context>
chip_gen: v6e
topology: v6e:2x2x1
jax: 0.10.0
libtpu: 0.0.40
codegen_flags: <defaults>
</compile_context>

<pallas_src>
import jax
import jax.numpy as jnp
from jax.experimental import pallas as pl
from jax.experimental.pallas import tpu as pltpu


# ----------------------------------------------------------------------------
# helpers
# ----------------------------------------------------------------------------
def _round_up(x, m):
    return (x + m - 1) // m * m


def _pick_chunk(n, max_chunk):
    """Largest divisor of n that is <= max_chunk (>= 1)."""
    for c in range(min(n, max_chunk), 0, -1):
        if n % c == 0:
            return c
    return 1


_GATE_ORDER = (0, 1, 3, 2)   # PyTorch (i, f, g, o) -> kernel layout (i, f, o, g)


def _pad_reorder_gate_rows(w, hidden, hidden_pad):
    """w: (4*hidden, K) -> (4*hidden_pad, K).

    Zero-pads each gate block to hidden_pad rows and reorders the gate blocks to
    (i, f, o, g) so the recurrence can apply sigmoid to one contiguous 3H slab.
    """
    k = w.shape[1]
    w4 = w.reshape(4, hidden, k)[jnp.array(_GATE_ORDER)]
    w4 = jnp.pad(w4, ((0, 0), (0, hidden_pad - hidden), (0, 0)))
    return w4.reshape(4 * hidden_pad, k)


# ----------------------------------------------------------------------------
# Kernel A: input projection  gates_x = x @ W_ih^T + b   (one big matmul)
# ----------------------------------------------------------------------------
def _input_proj_kernel(x_ref, wih_ref, b_ref, gx_ref):
    t_chunk, b_pad, in_sz = x_ref.shape
    tn = gx_ref.shape[-1]
    # Merge (T, B) into the sublane axis (B is a multiple of 8 -> layout-preserving).
    x2 = x_ref[...].reshape(t_chunk * b_pad, in_sz)           # bf16 (T*B, I)
    gates = jnp.dot(x2, wih_ref[...],                         # bf16 @ bf16 -> f32
                    preferred_element_type=jnp.float32)
    gates = gates + b_ref[...]                                # (1, tn) broadcast, f32
    gx_ref[...] = gates.reshape(t_chunk, b_pad, tn)


# ----------------------------------------------------------------------------
# Kernel B: recurrence over time, chunked; only h @ W_hh^T stays serial
# ----------------------------------------------------------------------------
def _recurrence_kernel(gx_ref, whh_ref, out_ref, hn_ref, cn_ref, h_sc, c_sc):
    c_idx = pl.program_id(1)                  # sequence-chunk index ("arbitrary")
    h_pad = h_sc.shape[1]
    t_chunk = gx_ref.shape[0]

    @pl.when(c_idx == 0)
    def _():
        h_sc[...] = jnp.zeros_like(h_sc)
        c_sc[...] = jnp.zeros_like(c_sc)

    whh = whh_ref[...]                        # bf16 (Hp, 4Hp), loaded once per chunk

    def step(t, carry):
        h_prev = h_sc[...]                    # f32 (Bt, Hp)
        c_prev = c_sc[...]                    # f32 (Bt, Hp)
        gates = gx_ref[t] + jnp.dot(h_prev.astype(whh.dtype), whh,
                                    preferred_element_type=jnp.float32)
        # Gate layout (i, f, o, g): one sigmoid over a lane-aligned 3H slab,
        # one tanh over the g slab.
        ifo = jax.nn.sigmoid(gates[:, :3 * h_pad])
        g_g = jnp.tanh(gates[:, 3 * h_pad:])
        i_g = ifo[:, 0 * h_pad:1 * h_pad]
        f_g = ifo[:, 1 * h_pad:2 * h_pad]
        o_g = ifo[:, 2 * h_pad:3 * h_pad]
        c_new = f_g * c_prev + i_g * g_g
        h_new = o_g * jnp.tanh(c_new)
        c_sc[...] = c_new
        h_sc[...] = h_new
        out_ref[t] = h_new.astype(out_ref.dtype)              # lane-dense full store
        return carry

    jax.lax.fori_loop(0, t_chunk, step, 0, unroll=True)

    @pl.when(c_idx == pl.num_programs(1) - 1)
    def _():
        hn_ref[0] = h_sc[...].astype(hn_ref.dtype)
        cn_ref[0] = c_sc[...].astype(cn_ref.dtype)


# ----------------------------------------------------------------------------
# Wrapper
# ----------------------------------------------------------------------------
def lstm_encoder_forward(x, w_ih, w_hh, b_ih, b_hh):
    """x: (seq_len, batch, input_size).  Returns (lstm_out, (h_n, c_n)) like nn.LSTM."""
    seq_len, batch, input_size = x.shape
    four_h = w_ih.shape[0]
    hidden = four_h // 4

    h_pad = _round_up(hidden, 128)            # lane-aligned gates / lane-dense stores
    b_pad = _round_up(batch, 8)               # sublane-aligned batch
    four_hp = 4 * h_pad

    # ---- glue: pad / reorder weights (plain JAX, runs once) ----
    wih_t = _pad_reorder_gate_rows(jnp.asarray(w_ih, jnp.float32), hidden, h_pad).T
    wih_t = wih_t.astype(jnp.bfloat16)                                   # (I, 4Hp)
    whh_p = _pad_reorder_gate_rows(jnp.asarray(w_hh, jnp.float32), hidden, h_pad)
    whh_p = jnp.pad(whh_p, ((0, 0), (0, h_pad - hidden)))
    whh_t = whh_p.T.astype(jnp.bfloat16)                                 # (Hp, 4Hp)
    bias = _pad_reorder_gate_rows((b_ih + b_hh).astype(jnp.float32).reshape(four_h, 1),
                                  hidden, h_pad).reshape(1, four_hp)     # (1, 4Hp) f32
    x_p = jnp.pad(jnp.asarray(x, jnp.float32),
                  ((0, 0), (0, b_pad - batch), (0, 0))).astype(jnp.bfloat16)

    # ---- chunking / tiling ----
    t_proj = _pick_chunk(seq_len, 64)          # big blocks for the one-shot projection
    n_lane_tiles = four_hp // 128
    tn4 = 128 * _pick_chunk(n_lane_tiles, 16)  # <=2048 lanes per output tile of Kernel A
    t_rec = _pick_chunk(seq_len, 16)           # unrolled in-kernel time loop per chunk
    n_chunks = seq_len // t_rec
    n_btiles = 2 if (b_pad >= 16 and b_pad % 16 == 0) else 1   # v7x: 2nd TensorCore
    b_tile = b_pad // n_btiles

    # ---- VMEM budget (rough; double-buffered blocks), leave headroom ----
    bytes_a = (2 * t_proj * b_pad * input_size * 2 + 2 * input_size * tn4 * 2
               + 2 * tn4 * 4 + 2 * t_proj * b_pad * tn4 * 4)
    bytes_b = (2 * h_pad * four_hp * 2 + 2 * t_rec * b_tile * four_hp * 4
               + 2 * t_rec * b_tile * h_pad * 4 + 4 * b_tile * h_pad * 4
               + 2 * b_tile * h_pad * 4)
    vmem_limit = int(min(max(2 * max(bytes_a, bytes_b), 16 << 20), 48 << 20))

    # ---- Kernel A: gates_x for all timesteps ----
    gates_x = pl.pallas_call(
        _input_proj_kernel,
        out_shape=jax.ShapeDtypeStruct((seq_len, b_pad, four_hp), jnp.float32),
        grid_spec=pltpu.PrefetchScalarGridSpec(
            num_scalar_prefetch=0,
            grid=(seq_len // t_proj, four_hp // tn4),
            in_specs=[
                pl.BlockSpec((t_proj, b_pad, input_size), lambda s, n: (s, 0, 0)),
                pl.BlockSpec((input_size, tn4), lambda s, n: (0, n)),
                pl.BlockSpec((1, tn4), lambda s, n: (0, n)),
            ],
            out_specs=pl.BlockSpec((t_proj, b_pad, tn4), lambda s, n: (s, 0, n)),
        ),
        compiler_params=pltpu.CompilerParams(
            dimension_semantics=("parallel", "parallel"),
            vmem_limit_bytes=vmem_limit),
    )(x_p, wih_t, bias)

    # ---- Kernel B: chunked recurrence ----
    lstm_out_p, h_n_p, c_n_p = pl.pallas_call(
        _recurrence_kernel,
        out_shape=(
            jax.ShapeDtypeStruct((seq_len, b_pad, h_pad), jnp.float32),
            jax.ShapeDtypeStruct((1, b_pad, h_pad), jnp.float32),
            jax.ShapeDtypeStruct((1, b_pad, h_pad), jnp.float32),
        ),
        grid_spec=pltpu.PrefetchScalarGridSpec(
            num_scalar_prefetch=0,
            grid=(n_btiles, n_chunks),
            in_specs=[
                pl.BlockSpec((t_rec, b_tile, four_hp), lambda b, c: (c, b, 0)),
                pl.BlockSpec((h_pad, four_hp), lambda b, c: (0, 0)),   # grid-invariant
            ],
            out_specs=[
                pl.BlockSpec((t_rec, b_tile, h_pad), lambda b, c: (c, b, 0)),
                pl.BlockSpec((1, b_tile, h_pad), lambda b, c: (0, b, 0)),
                pl.BlockSpec((1, b_tile, h_pad), lambda b, c: (0, b, 0)),
            ],
            scratch_shapes=[
                pltpu.VMEM((b_tile, h_pad), jnp.float32),   # h state
                pltpu.VMEM((b_tile, h_pad), jnp.float32),   # c state
            ],
        ),
        compiler_params=pltpu.CompilerParams(
            dimension_semantics=("parallel", "arbitrary"),
            vmem_limit_bytes=vmem_limit),
    )(gates_x, whh_t)

    # ---- slice padding off (glue) ----
    lstm_out = lstm_out_p[:, :batch, :hidden]
    h_n = h_n_p[:, :batch, :hidden]
    c_n = c_n_p[:, :batch, :hidden]
    return lstm_out, (h_n, c_n)


# ----------------------------------------------------------------------------
# Pure-JAX reference matching torch.nn.LSTM semantics (1 layer, f32)
# ----------------------------------------------------------------------------
def _reference_lstm(x, w_ih, w_hh, b_ih, b_hh):
    hidden = w_hh.shape[1]
    batch = x.shape[1]
    b = (b_ih + b_hh)[None, :]

    def step(carry, x_t):
        h, c = carry
        gates = x_t @ w_ih.T + h @ w_hh.T + b
        i = jax.nn.sigmoid(gates[:, 0 * hidden:1 * hidden])
        f = jax.nn.sigmoid(gates[:, 1 * hidden:2 * hidden])
        g = jnp.tanh(gates[:, 2 * hidden:3 * hidden])
        o = jax.nn.sigmoid(gates[:, 3 * hidden:4 * hidden])
        c = f * c + i * g
        h = o * jnp.tanh(c)
        return (h, c), h

    h0 = jnp.zeros((batch, hidden), jnp.float32)
    c0 = jnp.zeros((batch, hidden), jnp.float32)
    (h_n, c_n), outs = jax.lax.scan(step, (h0, c0), x)
    return outs, (h_n[None], c_n[None])


if __name__ == "__main__":
    seq_len, batch, input_size, hidden = 8, 2, 4, 32

    key = jax.random.PRNGKey(0)
    k0, k1, k2, k3, k4 = jax.random.split(key, 5)
    bound = 1.0 / jnp.sqrt(hidden)   # PyTorch default init range
    w_ih = jax.random.uniform(k0, (4 * hidden, input_size), jnp.float32, -bound, bound)
    w_hh = jax.random.uniform(k1, (4 * hidden, hidden), jnp.float32, -bound, bound)
    b_ih = jax.random.uniform(k2, (4 * hidden,), jnp.float32, -bound, bound)
    b_hh = jax.random.uniform(k3, (4 * hidden,), jnp.float32, -bound, bound)

    x = jax.random.normal(k4, (seq_len, batch, input_size), jnp.float32)

    lstm_out, (h_n, c_n) = lstm_encoder_forward(x, w_ih, w_hh, b_ih, b_hh)
    lstm_out = jax.block_until_ready(lstm_out)
    h_n = jax.block_until_ready(h_n)
    c_n = jax.block_until_ready(c_n)

    ref_out, (ref_h, ref_c) = _reference_lstm(x, w_ih, w_hh, b_ih, b_hh)
    # bf16 matmul operands (f32 accumulation / f32 state) -> loosened tolerance.
    assert jnp.allclose(lstm_out, ref_out, atol=3e-2, rtol=3e-2)
    assert jnp.allclose(h_n, ref_h, atol=3e-2, rtol=3e-2)
    assert jnp.allclose(c_n, ref_c, atol=3e-2, rtol=3e-2)

    print("KERNEL_OK")
</pallas_src>

<mosaic_0001>
module attributes {stable_mosaic.version = 11 : i64} {
  func.func @_input_proj_kernel(%arg0: i32, %arg1: i32, %arg2: memref<8x8x4xbf16, #tpu.memory_space<vmem>>, %arg3: memref<4x512xbf16, #tpu.memory_space<vmem>>, %arg4: memref<1x512xf32, #tpu.memory_space<vmem>>, %arg5: memref<8x8x512xf32, #tpu.memory_space<vmem>>) attributes {dimension_semantics = [#tpu.dimension_semantics<parallel>, #tpu.dimension_semantics<parallel>], iteration_bounds = array<i64: 1, 1>, scalar_prefetch = 0 : i64, scratch_operands = 0 : i64, tpu.core_type = #tpu.core_type<tc>, window_params = [{transform_indices = @transform_0, window_bounds = array<i64: 8, 8, 4>}, {transform_indices = @transform_1, window_bounds = array<i64: 4, 512>}, {transform_indices = @transform_2, window_bounds = array<i64: 1, 512>}, {transform_indices = @transform_3, window_bounds = array<i64: 8, 8, 512>}]} {
    %c0 = arith.constant 0 : index
    %c0_0 = arith.constant 0 : index
    %c0_1 = arith.constant 0 : index
    %0 = vector.load %arg2[%c0, %c0_0, %c0_1] : memref<8x8x4xbf16, #tpu.memory_space<vmem>>, vector<8x8x4xbf16>
    %1 = vector.shape_cast %0 : vector<8x8x4xbf16> to vector<64x4xbf16>
    %c0_2 = arith.constant 0 : index
    %c0_3 = arith.constant 0 : index
    %2 = vector.load %arg3[%c0_2, %c0_3] : memref<4x512xbf16, #tpu.memory_space<vmem>>, vector<4x512xbf16>
    %cst = arith.constant dense<0.000000e+00> : vector<64x512xf32>
    %3 = tpu.matmul %1, %2, %cst {dimension_numbers = #tpu.dot_dimension_numbers<[1], [0], [0], [1], [0, 0, 1, 1], [], []>} : vector<64x4xbf16>, vector<4x512xbf16>, vector<64x512xf32> -> vector<64x512xf32>
    %c0_4 = arith.constant 0 : index
    %c0_5 = arith.constant 0 : index
    %4 = vector.load %arg4[%c0_4, %c0_5] : memref<1x512xf32, #tpu.memory_space<vmem>>, vector<1x512xf32>
    %5 = vector.broadcast %4 : vector<1x512xf32> to vector<64x512xf32>
    %6 = arith.addf %3, %5 : vector<64x512xf32>
    %7 = vector.shape_cast %6 : vector<64x512xf32> to vector<8x8x512xf32>
    %c0_6 = arith.constant 0 : index
    %c0_7 = arith.constant 0 : index
    %c0_8 = arith.constant 0 : index
    %8 = vector.load %arg5[%c0_6, %c0_7, %c0_8] : memref<8x8x512xf32, #tpu.memory_space<vmem>>, vector<8x8x512xf32>
    tpu.vector_store %arg5[%c0_6, %c0_7, %c0_8], %7 {strides = array<i32>} : memref<8x8x512xf32, #tpu.memory_space<vmem>>, vector<8x8x512xf32>,
    return
  }
  func.func @transform_0(%arg0: i32, %arg1: i32) -> (i32, i32, i32) {
    %c0_i32 = arith.constant 0 : i32
    %c0_i32_0 = arith.constant 0 : i32
    %c0_i32_1 = arith.constant 0 : i32
    return %arg0, %c0_i32, %c0_i32_0 : i32, i32, i32
  }
  func.func @transform_1(%arg0: i32, %arg1: i32) -> (i32, i32) {
    %c0_i32 = arith.constant 0 : i32
    %c0_i32_0 = arith.constant 0 : i32
    return %c0_i32, %arg1 : i32, i32
  }
  func.func @transform_2(%arg0: i32, %arg1: i32) -> (i32, i32) {
    %c0_i32 = arith.constant 0 : i32
    %c0_i32_0 = arith.constant 0 : i32
    return %c0_i32, %arg1 : i32, i32
  }
  func.func @transform_3(%arg0: i32, %arg1: i32) -> (i32, i32, i32) {
    %c0_i32 = arith.constant 0 : i32
    %c0_i32_0 = arith.constant 0 : i32
    return %arg0, %c0_i32, %arg1 : i32, i32, i32
  }
}

</mosaic_0001>

<llo_original>
// kernel: tpu_custom_call.1
$region0: #{tpu_custom_call.1}
  #allocation0 [shape = 'u32[]', space=smem, size = 0x4, offset = 0x4, fixed_abs, tag = 'smem constant byte address 0x4 - core index']
  #allocation1 [shape = 'u32[144,128]{1,0:T(1,128)}', space=vmem, size = 0x12000, scoped, tag = 'internal scratch']
  %s0 = inlined_call_operand.vmem [shape: bf16[8,8,4], index: 0, kind: input, shape index: {}]
  %s1 = inlined_call_operand.vmem [shape: bf16[4,512], index: 1, kind: input, shape index: {}]
  %s2 = inlined_call_operand.vmem [shape: f32[1,512], index: 2, kind: input, shape index: {}]
  %s3 = inlined_call_operand.hbm [shape: f32[8,8,512], index: 3, kind: output, shape index: {}]
  %s4 = sld [smem:[#allocation0]]
  $region22: #{tpu_custom_call.1} parent=0
    _
  %s6 = ssub.s32 1, %s4
  %s7 = scalar_select 0, %s6, %s4
  $region1: #{tpu_custom_call.1} parent=0
    #allocation2 [shape = 'u8[131072]{0}', space=vmem, size = 0x20000, scoped, tag = 'output window, operand 0, single buffered']
    #allocation3 [shape = 's32[1]{0}', space=sflag, size = 0x4, scoped, tag = 'scoped memory for tpu_custom_call.1']
    %8 = vsyncpa [#allocation3], 0
    // Predicated region
    $region2: #{tpu_custom_call.1} parent=1 // pred_check
      _
    $region3: #{tpu_custom_call.1} parent=1 // pred_check_branch
      %10 = sbr.rel (0) target = $region5
    $region4: #{tpu_custom_call.1} parent=1 // pred_region
      _
    $region5: #{tpu_custom_call.1} parent=1 // pred_fallthru
      _
    // Predicated region
    $region6: #{tpu_custom_call.1} parent=1 // pred_check
      _
    $region7: #{tpu_custom_call.1} parent=1 // pred_check_branch
      %12 = sbr.rel (0) target = $region9
    $region8: #{tpu_custom_call.1} parent=1 // pred_region
      _
    $region9: #{tpu_custom_call.1} parent=1 // pred_fallthru
      _
    // Predicated region
    $region10: #{tpu_custom_call.1} parent=1 // pred_check
      _
    $region11: #{tpu_custom_call.1} parent=1 // pred_check_branch
      %14 = sbr.rel (0) target = $region13
    $region12: #{tpu_custom_call.1} parent=1 // pred_region
      _
    $region13: #{tpu_custom_call.1} parent=1 // pred_fallthru
      _
    %v16 = vld [vmem:[%s0] sm:$0xf]
    %v17 = vld [vmem:[%s0 + $0x4] sm:$0xf]
    %v18 = vld [vmem:[%s0 + $0x8] sm:$0xf]
    %v19 = vld [vmem:[%s0 + $0xc] sm:$0xf]
    %v20 = vld [vmem:[%s0 + $0x10] sm:$0xf]
    %v21 = vld [vmem:[%s0 + $0x14] sm:$0xf]
    %v22 = vld [vmem:[%s0 + $0x18] sm:$0xf]
    %v23 = vld [vmem:[%s0 + $0x1c] sm:$0xf]
    %v24 = vld [vmem:[%s1] sm:$0xff]
    %v25 = vld [vmem:[%s2] sm:$0xf]
    %v27 = vlaneseq
    %v28 = vshrl.u32 %v27, 7
    %v29 = vsub.s32 0, %v28
    %v30 = vrot.slane %v25, %v29
    %v31 = vlaneseq
    %v32 = vshrl.u32 %v31, 7
    %v33 = vsub.s32 1, %v32
    %v34 = vrot.slane %v25, %v33
    %v35 = vlaneseq
    %v36 = vshrl.u32 %v35, 7
    %v37 = vsub.s32 2, %v36
    %v38 = vrot.slane %v25, %v37
    %v39 = vlaneseq
    %v40 = vshrl.u32 %v39, 7
    %v41 = vsub.s32 3, %v40
    %v42 = vrot.slane %v25, %v41
    %v55 = vunpack.c.l.b16 %v16
    %v56 = vunpack.c.l.b16 %v17
    %v57 = vunpack.c.l.b16 %v18
    %v58 = vunpack.c.l.b16 %v19
    %v59 = vunpack.c.l.b16 %v20
    %v60 = vunpack.c.l.b16 %v21
    %v61 = vunpack.c.l.b16 %v22
    %v62 = vunpack.c.l.b16 %v23
    %v63 = vpack.c.b16 %v56, %v55
    %v64 = vpack.c.b16 %v58, %v57
    %v65 = vpack.c.b16 %v60, %v59
    %v66 = vpack.c.b16 %v62, %v61
    %v68 = vcombine.high %v24, %v24
    %v70 = vunpack.c.l.s4 1983009808
    %v71 = vunpack.c.0.s8 %v70
    %v72 = vlaneseq
    %v73 = vshrl.u32 %v72, 7
    %v74 = vsub.s32 %v71, %v73
    %v75 = vrot.slane %v24, %v74
    %v77 = vunpack.c.l.s4 1983009808
    %v78 = vunpack.c.0.s8 %v77
    %v79 = vlaneseq
    %v80 = vshrl.u32 %v79, 7
    %v81 = vsub.s32 %v78, %v80
    %v82 = vrot.slane %v68, %v81
    %v83 = vcombine.high %v75, %v75
    %v84 = vcombine.high %v82, %v82
    %vm85 = vcmask 31744
    %v87 = vsel %vm85, %v63, 0
    %v90 = vsel %vm85, %v64, 0
    %v93 = vsel %vm85, %v65, 0
    %v96 = vsel %vm85, %v66, 0
    %vm98 = vcmask 1041408
    %v100 = vsel %vm98, %v75, 0
    %v103 = vsel %vm98, %v83, 0
    %v106 = vsel %vm98, %v82, 0
    %v109 = vsel %vm98, %v84, 0
    %111 = vmatprep.subr.bf16.mxu0 0
    %112 = vmatpush1.bf16.msra.mxu0 0
    %113 = vmatprep.subr.bf16.mxu0 0
    %114 = vmatpush1.bf16.msra.mxu0 0
    %115 = vmatprep.subr.bf16.mxu0 0
    %116 = vmatpush1.bf16.msra.mxu0 0
    %117 = vmatprep.subr.bf16.mxu0 0
    %118 = vmatpush1.bf16.msra.mxu0 0
    %119 = vmatprep.subr.bf16.mxu0 0
    %120 = vmatpush1.bf16.msra.mxu0 0
    %121 = vmatprep.subr.bf16.mxu0 0
    %122 = vmatpush1.bf16.msra.mxu0 0
    %123 = vmatprep.subr.bf16.mxu0 0
    %124 = vmatpush1.bf16.msra.mxu0 0
    %125 = vmatprep.subr.bf16.mxu0 %v103
    %126 = vmatpush1.bf16.msra.mxu0 %v100
    %127 = vmatprep.subr.bf16.mxu0 0
    %128 = vmatpush2.bf16.msra.mxu0 0
    %129 = vmatprep.subr.bf16.mxu0 0
    %130 = vmatpush2.bf16.msra.mxu0 0
    %131 = vmatprep.subr.bf16.mxu0 0
    %132 = vmatpush2.bf16.msra.mxu0 0
    %133 = vmatprep.subr.bf16.mxu0 0
    %134 = vmatpush2.bf16.msra.mxu0 0
    %135 = vmatprep.subr.bf16.mxu0 0
    %136 = vmatpush2.bf16.msra.mxu0 0
    %137 = vmatprep.subr.bf16.mxu0 0
    %138 = vmatpush2.bf16.msra.mxu0 0
    %139 = vmatprep.subr.bf16.mxu0 0
    %140 = vmatpush2.bf16.msra.mxu0 0
    %141 = vmatprep.subr.bf16.mxu0 0
    %142 = vmatpush2.bf16.msra.mxu0 0
    %143 = vmatprep.mubr.bf16.mxu0 0
    %144 = vmatmul.mubr.bf16.gmra.mxu0 %v87
    %v145 = vpop.f32.mrf.mxu0
    %v146 = vadd.f32 %v30, %v145
    %v147 = vpop.f32.mrf.mxu0
    %v148 = vadd.f32 %v34, %v147
    %v149 = vpop.f32.mrf.mxu0
    %v150 = vadd.f32 %v30, %v149
    %v151 = vpop.f32.mrf.mxu0
    %v152 = vadd.f32 %v34, %v151
    %153 = vmatprep.mubr.bf16.mxu0 0
    %154 = vmatmul.mubr.bf16.gmra.mxu0 %v90
    %v155 = vpop.f32.mrf.mxu0
    %v156 = vadd.f32 %v30, %v155
    %v157 = vpop.f32.mrf.mxu0
    %v158 = vadd.f32 %v34, %v157
    %v159 = vpop.f32.mrf.mxu0
    %v160 = vadd.f32 %v30, %v159
    %v161 = vpop.f32.mrf.mxu0
    %v162 = vadd.f32 %v34, %v161
    %163 = vmatprep.mubr.bf16.mxu0 0
    %164 = vmatmul.mubr.bf16.gmra.mxu0 %v93
    %v165 = vpop.f32.mrf.mxu0
    %v166 = vadd.f32 %v30, %v165
    %v167 = vpop.f32.mrf.mxu0
    %v168 = vadd.f32 %v34, %v167
    %v169 = vpop.f32.mrf.mxu0
    %v170 = vadd.f32 %v30, %v169
    %v171 = vpop.f32.mrf.mxu0
    %v172 = vadd.f32 %v34, %v171
    %173 = vmatprep.mubr.bf16.mxu0 0
    %174 = vmatmul.mubr.bf16.gmra.mxu0 %v96
    %v175 = vpop.f32.mrf.mxu0
    %v176 = vadd.f32 %v30, %v175
    %v177 = vpop.f32.mrf.mxu0
    %v178 = vadd.f32 %v34, %v177
    %v179 = vpop.f32.mrf.mxu0
    %v180 = vadd.f32 %v30, %v179
    %v181 = vpop.f32.mrf.mxu0
    %v182 = vadd.f32 %v34, %v181
    %183 = vdwg.mxu0
    %184 = vmatprep.subr.bf16.mxu0 0
    %185 = vmatpush1.bf16.msra.mxu0 0
    %186 = vmatprep.subr.bf16.mxu0 0
    %187 = vmatpush1.bf16.msra.mxu0 0
    %188 = vmatprep.subr.bf16.mxu0 0
    %189 = vmatpush1.bf16.msra.mxu0 0
    %190 = vmatprep.subr.bf16.mxu0 0
    %191 = vmatpush1.bf16.msra.mxu0 0
    %192 = vmatprep.subr.bf16.mxu0 0
    %193 = vmatpush1.bf16.msra.mxu0 0
    %194 = vmatprep.subr.bf16.mxu0 0
    %195 = vmatpush1.bf16.msra.mxu0 0
    %196 = vmatprep.subr.bf16.mxu0 0
    %197 = vmatpush1.bf16.msra.mxu0 0
    %198 = vmatprep.subr.bf16.mxu0 %v109
    %199 = vmatpush1.bf16.msra.mxu0 %v106
    %200 = vmatprep.subr.bf16.mxu0 0
    %201 = vmatpush2.bf16.msra.mxu0 0
    %202 = vmatprep.subr.bf16.mxu0 0
    %203 = vmatpush2.bf16.msra.mxu0 0
    %204 = vmatprep.subr.bf16.mxu0 0
    %205 = vmatpush2.bf16.msra.mxu0 0
    %206 = vmatprep.subr.bf16.mxu0 0
    %207 = vmatpush2.bf16.msra.mxu0 0
    %208 = vmatprep.subr.bf16.mxu0 0
    %209 = vmatpush2.bf16.msra.mxu0 0
    %210 = vmatprep.subr.bf16.mxu0 0
    %211 = vmatpush2.bf16.msra.mxu0 0
    %212 = vmatprep.subr.bf16.mxu0 0
    %213 = vmatpush2.bf16.msra.mxu0 0
    %214 = vmatprep.subr.bf16.mxu0 0
    %215 = vmatpush2.bf16.msra.mxu0 0
    %216 = vmatprep.mubr.bf16.mxu0 0
    %217 = vmatmul.mubr.bf16.gmra.mxu0 %v87
    %v218 = vpop.f32.mrf.mxu0
    %v219 = vadd.f32 %v38, %v218
    %v220 = vpop.f32.mrf.mxu0
    %v221 = vadd.f32 %v42, %v220
    %v222 = vpop.f32.mrf.mxu0
    %v223 = vadd.f32 %v38, %v222
    %v224 = vpop.f32.mrf.mxu0
    %v225 = vadd.f32 %v42, %v224
    %226 = vmatprep.mubr.bf16.mxu0 0
    %227 = vmatmul.mubr.bf16.gmra.mxu0 %v90
    %v228 = vpop.f32.mrf.mxu0
    %v229 = vadd.f32 %v38, %v228
    %v230 = vpop.f32.mrf.mxu0
    %v231 = vadd.f32 %v42, %v230
    %v232 = vpop.f32.mrf.mxu0
    %v233 = vadd.f32 %v38, %v232
    %v234 = vpop.f32.mrf.mxu0
    %v235 = vadd.f32 %v42, %v234
    %236 = vmatprep.mubr.bf16.mxu0 0
    %237 = vmatmul.mubr.bf16.gmra.mxu0 %v93
    %v238 = vpop.f32.mrf.mxu0
    %v239 = vadd.f32 %v38, %v238
    %v240 = vpop.f32.mrf.mxu0
    %v241 = vadd.f32 %v42, %v240
    %v242 = vpop.f32.mrf.mxu0
    %v243 = vadd.f32 %v38, %v242
    %v244 = vpop.f32.mrf.mxu0
    %v245 = vadd.f32 %v42, %v244
    %246 = vmatprep.mubr.bf16.mxu0 0
    %247 = vmatmul.mubr.bf16.gmra.mxu0 %v96
    %v248 = vpop.f32.mrf.mxu0
    %v249 = vadd.f32 %v38, %v248
    %v250 = vpop.f32.mrf.mxu0
    %v251 = vadd.f32 %v42, %v250
    %v252 = vpop.f32.mrf.mxu0
    %v253 = vadd.f32 %v38, %v252
    %v254 = vpop.f32.mrf.mxu0
    %v255 = vadd.f32 %v42, %v254
    %256 = vdwg.mxu0
    %257 = vst [vmem:[#allocation2] sm:$0xff] %v146
    %258 = vst [vmem:[#allocation2 + $0x8] sm:$0xff] %v148
    %259 = vst [vmem:[#allocation2 + $0x10] sm:$0xff] %v219
    %260 = vst [vmem:[#allocation2 + $0x18] sm:$0xff] %v221
    %261 = vst [vmem:[#allocation2 + $0x20] sm:$0xff] %v150
    %262 = vst [vmem:[#allocation2 + $0x28] sm:$0xff] %v152
    %263 = vst [vmem:[#allocation2 + $0x30] sm:$0xff] %v223
    %264 = vst [vmem:[#allocation2 + $0x38] sm:$0xff] %v225
    %265 = vst [vmem:[#allocation2 + $0x40] sm:$0xff] %v156
    %266 = vst [vmem:[#allocation2 + $0x48] sm:$0xff] %v158
    %267 = vst [vmem:[#allocation2 + $0x50] sm:$0xff] %v229
    %268 = vst [vmem:[#allocation2 + $0x58] sm:$0xff] %v231
    %269 = vst [vmem:[#allocation2 + $0x60] sm:$0xff] %v160
    %270 = vst [vmem:[#allocation2 + $0x68] sm:$0xff] %v162
    %271 = vst [vmem:[#allocation2 + $0x70] sm:$0xff] %v233
    %272 = vst [vmem:[#allocation2 + $0x78] sm:$0xff] %v235
    %273 = vst [vmem:[#allocation2 + $0x80] sm:$0xff] %v166
    %274 = vst [vmem:[#allocation2 + $0x88] sm:$0xff] %v168
    %275 = vst [vmem:[#allocation2 + $0x90] sm:$0xff] %v239
    %276 = vst [vmem:[#allocation2 + $0x98] sm:$0xff] %v241
    %277 = vst [vmem:[#allocation2 + $0xa0] sm:$0xff] %v170
    %278 = vst [vmem:[#allocation2 + $0xa8] sm:$0xff] %v172
    %279 = vst [vmem:[#allocation2 + $0xb0] sm:$0xff] %v243
    %280 = vst [vmem:[#allocation2 + $0xb8] sm:$0xff] %v245
    %281 = vst [vmem:[#allocation2 + $0xc0] sm:$0xff] %v176
    %282 = vst [vmem:[#allocation2 + $0xc8] sm:$0xff] %v178
    %283 = vst [vmem:[#allocation2 + $0xd0] sm:$0xff] %v249
    %284 = vst [vmem:[#allocation2 + $0xd8] sm:$0xff] %v251
    %285 = vst [vmem:[#allocation2 + $0xe0] sm:$0xff] %v180
    %286 = vst [vmem:[#allocation2 + $0xe8] sm:$0xff] %v182
    %287 = vst [vmem:[#allocation2 + $0xf0] sm:$0xff] %v253
    %288 = vst [vmem:[#allocation2 + $0xf8] sm:$0xff] %v255
    // Predicated region
    $region14: #{tpu_custom_call.1} parent=1 // pred_check
      _
    $region15: #{tpu_custom_call.1} parent=1 // pred_check_branch
      %290 = sbr.rel (0) target = $region17
    $region16: #{tpu_custom_call.1} parent=1 // pred_region
      %s292 = ssub.s32 4096, 4096
      %293 = vsyncadd [#allocation3], %s292
      %s294 = sshll.u32 [#allocation2], 4
      %s295 = int_to_ptr.vmem [resolvable:$true] %s294
      %300 = dma.vmem_to_hbm [thread:$0]  %s295, 4096, %s3, [#allocation3], 512, 512, 32
    $region17: #{tpu_custom_call.1} parent=1 // pred_fallthru
      _
    // Predicated region
    $region18: #{tpu_custom_call.1} parent=1 // pred_check
      _
    $region19: #{tpu_custom_call.1} parent=1 // pred_check_branch
      %302 = sbr.rel (0) target = $region21
    $region20: #{tpu_custom_call.1} parent=1 // pred_region
      %303 = dma.done [#allocation3], 4096
    $region21: #{tpu_custom_call.1} parent=1 // pred_fallthru
      _
    %304 = vsyncpa [#allocation3], 1

</llo_original>
